<compile_context>
chip_gen: v7x
topology: tpu7x:2x2x1
jax: 0.10.0
libtpu: 0.0.40
codegen_flags: <defaults>
</compile_context>

<pallas_src>
import jax
import jax.numpy as jnp
from jax.experimental import pallas as pl
from jax.experimental.pallas import tpu as pltpu


def _neuromod_kernel(x_ref, dn_ref, wg_ref, bg_ref, wf_ref, bf_ref, out_ref):
    """One token tile.

    x_ref  : [TM, H]   flattened tokens
    dn_ref : [TM, 2]   per-row (dopamine, norepinephrine), broadcast per batch
    wg_ref : [H, H]    dopamine_gate weight, [in, out] layout
    bg_ref : [1, H]    dopamine_gate bias
    wf_ref : [H, H]    norepinephrine_filter weight, [in, out] layout
    bf_ref : [1, H]    norepinephrine_filter bias
    out_ref: [TM, H]
    """
    x = x_ref[...]
    d = dn_ref[:, 0:1]          # [TM, 1] dopamine
    n = dn_ref[:, 1:2]          # [TM, 1] norepinephrine

    # x_gate = sigmoid(dopamine_gate(x));  x = x * (1 + dopamine * x_gate)
    gate = jax.nn.sigmoid(
        jnp.dot(x, wg_ref[...], preferred_element_type=jnp.float32) + bg_ref[...])
    xg = x * (1.0 + d * gate)

    # x_noise = tanh(norepinephrine_filter(x_gated));  x = x + norepinephrine * x_noise
    # (filter is applied to the ALREADY gated x, exactly as the PyTorch code does)
    noise = jnp.tanh(
        jnp.dot(xg, wf_ref[...], preferred_element_type=jnp.float32) + bf_ref[...])
    out_ref[...] = xg + n * noise


def init_params(key, hidden_size):
    """Deterministic init mimicking nn.Linear default: U(-1/sqrt(in), 1/sqrt(in)).

    Weights are stored pre-transposed as [in_features, out_features] so the forward
    pass never has to materialize a transpose.
    """
    ks = jax.random.split(key, 6)
    bound = 1.0 / (hidden_size ** 0.5)

    def u(k, shape):
        return jax.random.uniform(k, shape, jnp.float32, -bound, bound)

    return {
        "dopamine_gate_wt": u(ks[0], (hidden_size, hidden_size)),
        "dopamine_gate_b": u(ks[1], (hidden_size,)),
        "norepinephrine_filter_wt": u(ks[2], (hidden_size, hidden_size)),
        "norepinephrine_filter_b": u(ks[3], (hidden_size,)),
        "context_modulation_wt": u(ks[4], (hidden_size, 2)),
        "context_modulation_b": u(ks[5], (2,)),
    }


def _round_up(v, m):
    return ((v + m - 1) // m) * m


def neurotransmitter_forward(x, params, *, max_tile_rows=512):
    """Pallas-backed equivalent of NeurotransmitterModule.forward(x, brain_state=None)."""
    if x.ndim < 3:
        zero = jnp.asarray(0.0, jnp.float32)
        return x, {"dopamine": zero, "norepinephrine": zero}
    B, S, H = x.shape
    if B == 0 or S == 0 or H == 0:
        zero = jnp.asarray(0.0, jnp.float32)
        return x, {"dopamine": zero, "norepinephrine": zero}

    x = x.astype(jnp.float32)

    # ---- context modulation: tiny seq-mean + [B,H]@[H,2]; stays in plain XLA ----
    ctx = jnp.mean(x, axis=1)                                                   # [B, H]
    neuromod = ctx @ params["context_modulation_wt"] + params["context_modulation_b"]  # [B, 2]
    dopamine = neuromod[:, 0:1]                                                 # [B, 1]
    norepinephrine = neuromod[:, 1:2]                                           # [B, 1]

    # Per-row (dopamine, norepinephrine) for the flattened token slab.
    rows = B * S
    dn_rows = jnp.broadcast_to(neuromod[:, None, :], (B, S, 2)).reshape(rows, 2)
    x_flat = x.reshape(rows, H)

    # ---- tile over token rows: multiple of 8 sublanes, up to max_tile_rows ----
    if rows <= max_tile_rows:
        tm = max(8, _round_up(rows, 8))
    else:
        tm = max_tile_rows
    rows_p = _round_up(rows, tm)
    if rows_p != rows:
        pad = rows_p - rows
        x_flat = jnp.pad(x_flat, ((0, pad), (0, 0)))
        dn_rows = jnp.pad(dn_rows, ((0, pad), (0, 0)))

    wg = params["dopamine_gate_wt"]                       # [H, H]
    bg = params["dopamine_gate_b"].reshape(1, H)          # [1, H]
    wf = params["norepinephrine_filter_wt"]               # [H, H]
    bf = params["norepinephrine_filter_b"].reshape(1, H)  # [1, H]

    grid = (rows_p // tm,)

    bytes_f32 = 4
    # double-buffered x/out tiles + dn tiles + resident weights/biases, with 2x headroom
    vmem_need = (2 * 2 * tm * H + 2 * tm * 2 + 2 * H * H + 2 * H) * bytes_f32
    vmem_limit = min(48 * 1024 * 1024, max(16 * 1024 * 1024, 2 * vmem_need))

    cost = pl.CostEstimate(
        flops=4 * rows_p * H * H,                 # 2 matmuls x 2 flops/MAC
        transcendentals=2 * rows_p * H,           # sigmoid + tanh
        bytes_accessed=(2 * rows_p * H + rows_p * 2 + 2 * H * H + 2 * H) * bytes_f32,
    )

    out_flat = pl.pallas_call(
        _neuromod_kernel,
        out_shape=jax.ShapeDtypeStruct((rows_p, H), jnp.float32),
        grid=grid,
        in_specs=[
            pl.BlockSpec((tm, H), lambda i: (i, 0)),   # x tile (pipelined)
            pl.BlockSpec((tm, 2), lambda i: (i, 0)),   # dopamine/norepinephrine rows
            pl.BlockSpec((H, H), lambda i: (0, 0)),    # Wg (resident)
            pl.BlockSpec((1, H), lambda i: (0, 0)),    # bg (resident)
            pl.BlockSpec((H, H), lambda i: (0, 0)),    # Wf (resident)
            pl.BlockSpec((1, H), lambda i: (0, 0)),    # bf (resident)
        ],
        out_specs=pl.BlockSpec((tm, H), lambda i: (i, 0)),
        compiler_params=pltpu.CompilerParams(
            dimension_semantics=("parallel",),
            vmem_limit_bytes=vmem_limit,
        ),
        cost_estimate=cost,
    )(x_flat, dn_rows, wg, bg, wf, bf)

    out = out_flat[:rows].reshape(B, S, H)
    modulation = {
        "dopamine": dopamine.mean(),
        "norepinephrine": norepinephrine.mean(),
    }
    return out, modulation


def _reference_forward(x, params):
    """Pure-JAX reference mirroring the PyTorch code (brain_state=None)."""
    x = x.astype(jnp.float32)
    ctx = jnp.mean(x, axis=1)
    neuromod = ctx @ params["context_modulation_wt"] + params["context_modulation_b"]
    dopamine = neuromod[:, 0:1]
    norepinephrine = neuromod[:, 1:2]
    gate = jax.nn.sigmoid(x @ params["dopamine_gate_wt"] + params["dopamine_gate_b"])
    x = x * (1.0 + dopamine[:, None, :] * gate)
    noise = jnp.tanh(x @ params["norepinephrine_filter_wt"]
                     + params["norepinephrine_filter_b"])
    x = x + norepinephrine[:, None, :] * noise
    return x, dopamine.mean(), norepinephrine.mean()


if __name__ == "__main__":
    B, S, H = 2, 8, 32
    key = jax.random.PRNGKey(0)
    k_x, k_p = jax.random.split(key)
    x = jax.random.normal(k_x, (B, S, H), dtype=jnp.float32)
    params = init_params(k_p, H)

    fwd = jax.jit(neurotransmitter_forward)
    out, modulation = fwd(x, params)
    out = jax.block_until_ready(out)
    dopa = jax.block_until_ready(modulation["dopamine"])
    nore = jax.block_until_ready(modulation["norepinephrine"])

    # Loose-tolerance sanity check vs pure-JAX reference (f32 MXU dot may be multi-pass).
    ref_out, ref_d, ref_n = _reference_forward(x, params)
    assert out.shape == (B, S, H)
    assert jnp.allclose(out, ref_out, rtol=5e-2, atol=5e-2)
    assert jnp.allclose(dopa, ref_d, rtol=5e-2, atol=5e-2)
    assert jnp.allclose(nore, ref_n, rtol=5e-2, atol=5e-2)

    print("KERNEL_OK")
</pallas_src>

<mosaic_0001>
module attributes {stable_mosaic.version = 11 : i64} {
  func.func @_neuromod_kernel(%arg0: i32, %arg1: memref<16x32xf32, #tpu.memory_space<vmem>>, %arg2: memref<16x2xf32, #tpu.memory_space<vmem>>, %arg3: memref<32x32xf32, #tpu.memory_space<vmem>>, %arg4: memref<1x32xf32, #tpu.memory_space<vmem>>, %arg5: memref<32x32xf32, #tpu.memory_space<vmem>>, %arg6: memref<1x32xf32, #tpu.memory_space<vmem>>, %arg7: memref<16x32xf32, #tpu.memory_space<vmem>>) attributes {dimension_semantics = [#tpu.dimension_semantics<parallel>], iteration_bounds = array<i64: 1>, scalar_prefetch = 0 : i64, scratch_operands = 0 : i64, tpu.core_type = #tpu.core_type<tc>, window_params = [{transform_indices = @transform_0, window_bounds = array<i64: 16, 32>}, {transform_indices = @transform_1, window_bounds = array<i64: 16, 2>}, {pipeline_mode = #tpu.pipeline_mode<synchronous>, transform_indices = @transform_2, window_bounds = array<i64: 32, 32>}, {pipeline_mode = #tpu.pipeline_mode<synchronous>, transform_indices = @transform_3, window_bounds = array<i64: 1, 32>}, {pipeline_mode = #tpu.pipeline_mode<synchronous>, transform_indices = @transform_4, window_bounds = array<i64: 32, 32>}, {pipeline_mode = #tpu.pipeline_mode<synchronous>, transform_indices = @transform_5, window_bounds = array<i64: 1, 32>}, {transform_indices = @transform_6, window_bounds = array<i64: 16, 32>}]} {
    %c0 = arith.constant 0 : index
    %c0_0 = arith.constant 0 : index
    %0 = vector.load %arg1[%c0, %c0_0] : memref<16x32xf32, #tpu.memory_space<vmem>>, vector<16x32xf32>
    %c0_1 = arith.constant 0 : index
    %c0_2 = arith.constant 0 : index
    %1 = vector.load %arg2[%c0_1, %c0_2] : memref<16x2xf32, #tpu.memory_space<vmem>>, vector<16x1xf32>
    %c0_3 = arith.constant 0 : index
    %c1 = arith.constant 1 : index
    %2 = vector.load %arg2[%c0_3, %c1] : memref<16x2xf32, #tpu.memory_space<vmem>>, vector<16x1xf32>
    %c0_4 = arith.constant 0 : index
    %c0_5 = arith.constant 0 : index
    %3 = vector.load %arg3[%c0_4, %c0_5] : memref<32x32xf32, #tpu.memory_space<vmem>>, vector<32x32xf32>
    %cst = arith.constant dense<0.000000e+00> : vector<16x32xf32>
    %4 = tpu.matmul %0, %3, %cst {dimension_numbers = #tpu.dot_dimension_numbers<[1], [0], [0], [1], [0, 0, 1, 1], [], []>} : vector<16x32xf32>, vector<32x32xf32>, vector<16x32xf32> -> vector<16x32xf32>
    %c0_6 = arith.constant 0 : index
    %c0_7 = arith.constant 0 : index
    %5 = vector.load %arg4[%c0_6, %c0_7] : memref<1x32xf32, #tpu.memory_space<vmem>>, vector<1x32xf32>
    %6 = vector.broadcast %5 : vector<1x32xf32> to vector<16x32xf32>
    %7 = arith.addf %4, %6 : vector<16x32xf32>
    %8 = arith.negf %7 : vector<16x32xf32>
    %9 = math.exp %8 : vector<16x32xf32>
    %cst_8 = arith.constant 1.000000e+00 : f32
    %10 = vector.broadcast %cst_8 : f32 to vector<16x32xf32>
    %11 = arith.addf %10, %9 : vector<16x32xf32>
    %12 = arith.divf %10, %11 : vector<16x32xf32>
    %13 = vector.broadcast %1 : vector<16x1xf32> to vector<16x32xf32>
    %14 = arith.mulf %13, %12 : vector<16x32xf32>
    %cst_9 = arith.constant 1.000000e+00 : f32
    %15 = vector.broadcast %cst_9 : f32 to vector<16x32xf32>
    %16 = arith.addf %15, %14 : vector<16x32xf32>
    %17 = arith.mulf %0, %16 : vector<16x32xf32>
    %c0_10 = arith.constant 0 : index
    %c0_11 = arith.constant 0 : index
    %18 = vector.load %arg5[%c0_10, %c0_11] : memref<32x32xf32, #tpu.memory_space<vmem>>, vector<32x32xf32>
    %cst_12 = arith.constant dense<0.000000e+00> : vector<16x32xf32>
    %19 = tpu.matmul %17, %18, %cst_12 {dimension_numbers = #tpu.dot_dimension_numbers<[1], [0], [0], [1], [0, 0, 1, 1], [], []>} : vector<16x32xf32>, vector<32x32xf32>, vector<16x32xf32> -> vector<16x32xf32>
    %c0_13 = arith.constant 0 : index
    %c0_14 = arith.constant 0 : index
    %20 = vector.load %arg6[%c0_13, %c0_14] : memref<1x32xf32, #tpu.memory_space<vmem>>, vector<1x32xf32>
    %21 = vector.broadcast %20 : vector<1x32xf32> to vector<16x32xf32>
    %22 = arith.addf %19, %21 : vector<16x32xf32>
    %23 = math.tanh %22 : vector<16x32xf32>
    %24 = vector.broadcast %2 : vector<16x1xf32> to vector<16x32xf32>
    %25 = arith.mulf %24, %23 : vector<16x32xf32>
    %26 = arith.addf %17, %25 : vector<16x32xf32>
    %c0_15 = arith.constant 0 : index
    %c0_16 = arith.constant 0 : index
    %27 = vector.load %arg7[%c0_15, %c0_16] : memref<16x32xf32, #tpu.memory_space<vmem>>, vector<16x32xf32>
    tpu.vector_store %arg7[%c0_15, %c0_16], %26 {strides = array<i32>} : memref<16x32xf32, #tpu.memory_space<vmem>>, vector<16x32xf32>,
    return
  }
  func.func @transform_0(%arg0: i32) -> (i32, i32) {
    %c0_i32 = arith.constant 0 : i32
    %c0_i32_0 = arith.constant 0 : i32
    return %arg0, %c0_i32 : i32, i32
  }
  func.func @transform_1(%arg0: i32) -> (i32, i32) {
    %c0_i32 = arith.constant 0 : i32
    %c0_i32_0 = arith.constant 0 : i32
    return %arg0, %c0_i32 : i32, i32
  }
  func.func @transform_2(%arg0: i32) -> (i32, i32) {
    %c0_i32 = arith.constant 0 : i32
    %c0_i32_0 = arith.constant 0 : i32
    %c0_i32_1 = arith.constant 0 : i32
    return %c0_i32, %c0_i32_0 : i32, i32
  }
  func.func @transform_3(%arg0: i32) -> (i32, i32) {
    %c0_i32 = arith.constant 0 : i32
    %c0_i32_0 = arith.constant 0 : i32
    %c0_i32_1 = arith.constant 0 : i32
    return %c0_i32, %c0_i32_0 : i32, i32
  }
  func.func @transform_4(%arg0: i32) -> (i32, i32) {
    %c0_i32 = arith.constant 0 : i32
    %c0_i32_0 = arith.constant 0 : i32
    %c0_i32_1 = arith.constant 0 : i32
    return %c0_i32, %c0_i32_0 : i32, i32
  }
  func.func @transform_5(%arg0: i32) -> (i32, i32) {
    %c0_i32 = arith.constant 0 : i32
    %c0_i32_0 = arith.constant 0 : i32
    %c0_i32_1 = arith.constant 0 : i32
    return %c0_i32, %c0_i32_0 : i32, i32
  }
  func.func @transform_6(%arg0: i32) -> (i32, i32) {
    %c0_i32 = arith.constant 0 : i32
    %c0_i32_0 = arith.constant 0 : i32
    return %arg0, %c0_i32 : i32, i32
  }
}

</mosaic_0001>

<llo_original>
// kernel: neurotransmitter_forward.1
$region0: #{neurotransmitter_forward.1}
  #allocation0 [shape = 'u32[]', space=smem, size = 0x4, offset = 0x4, fixed_abs, tag = 'smem constant byte address 0x4 - core index']
  #allocation1 [shape = 'u32[144,128]{1,0:T(1,128)}', space=vmem, size = 0x12000, scoped, tag = 'internal scratch']
  %s0 = inlined_call_operand.vmem [shape: f32[16,32], index: 0, kind: input, shape index: {}]
  %s1 = inlined_call_operand.vmem [shape: f32[16,2], index: 1, kind: input, shape index: {}]
  %s2 = inlined_call_operand.vmem [shape: f32[32,32], index: 2, kind: input, shape index: {}]
  %s3 = inlined_call_operand.vmem [shape: f32[1,32], index: 3, kind: input, shape index: {}]
  %s4 = inlined_call_operand.vmem [shape: f32[32,32], index: 4, kind: input, shape index: {}]
  %s5 = inlined_call_operand.vmem [shape: f32[1,32], index: 5, kind: input, shape index: {}]
  %s6 = inlined_call_operand.hbm [shape: f32[16,32], index: 6, kind: output, shape index: {}]
  %s7 = sld [smem:[#allocation0]]
  $region34: #{neurotransmitter_forward.1} parent=0
    _
  %s9 = ssub.s32 1, %s7
  %s10 = scalar_select 0, %s9, %s7
  $region1: #{neurotransmitter_forward.1} parent=0
    #allocation2 [shape = 'u8[8192]{0}', space=vmem, size = 0x2000, scoped, tag = 'output window, operand 0, single buffered']
    #allocation3 [shape = 's32[1]{0}', space=sflag, size = 0x4, scoped, tag = 'scoped memory for neurotransmitter_forward.1']
    %11 = vsyncpa [#allocation3], 0
    // Predicated region
    $region2: #{neurotransmitter_forward.1} parent=1 // pred_check
      _
    $region3: #{neurotransmitter_forward.1} parent=1 // pred_check_branch
      %13 = sbr.rel (0) target = $region5
    $region4: #{neurotransmitter_forward.1} parent=1 // pred_region
      _
    $region5: #{neurotransmitter_forward.1} parent=1 // pred_fallthru
      _
    // Predicated region
    $region6: #{neurotransmitter_forward.1} parent=1 // pred_check
      _
    $region7: #{neurotransmitter_forward.1} parent=1 // pred_check_branch
      %15 = sbr.rel (0) target = $region9
    $region8: #{neurotransmitter_forward.1} parent=1 // pred_region
      _
    $region9: #{neurotransmitter_forward.1} parent=1 // pred_fallthru
      _
    // Predicated region
    $region10: #{neurotransmitter_forward.1} parent=1 // pred_check
      _
    $region11: #{neurotransmitter_forward.1} parent=1 // pred_check_branch
      %17 = sbr.rel (0) target = $region13
    $region12: #{neurotransmitter_forward.1} parent=1 // pred_region
      _
    $region13: #{neurotransmitter_forward.1} parent=1 // pred_fallthru
      _
    // Predicated region
    $region14: #{neurotransmitter_forward.1} parent=1 // pred_check
      _
    $region15: #{neurotransmitter_forward.1} parent=1 // pred_check_branch
      %19 = sbr.rel (0) target = $region17
    $region16: #{neurotransmitter_forward.1} parent=1 // pred_region
      _
    $region17: #{neurotransmitter_forward.1} parent=1 // pred_fallthru
      _
    // Predicated region
    $region18: #{neurotransmitter_forward.1} parent=1 // pred_check
      _
    $region19: #{neurotransmitter_forward.1} parent=1 // pred_check_branch
      %21 = sbr.rel (0) target = $region21
    $region20: #{neurotransmitter_forward.1} parent=1 // pred_region
      _
    $region21: #{neurotransmitter_forward.1} parent=1 // pred_fallthru
      _
    // Predicated region
    $region22: #{neurotransmitter_forward.1} parent=1 // pred_check
      _
    $region23: #{neurotransmitter_forward.1} parent=1 // pred_check_branch
      %23 = sbr.rel (0) target = $region25
    $region24: #{neurotransmitter_forward.1} parent=1 // pred_region
      _
    $region25: #{neurotransmitter_forward.1} parent=1 // pred_fallthru
      _
    %v24 = vld [vmem:[%s0] sm:$0xff]
    %v25 = vld [vmem:[%s0 + $0x8] sm:$0xff]
    %v26 = vld [vmem:[%s1] sm:$0xff]
    %v27 = vld [vmem:[%s1 + $0x8] sm:$0xff]
    %v28 = vld [vmem:[%s2] sm:$0xff]
    %v29 = vld [vmem:[%s2 + $0x8] sm:$0xff]
    %v30 = vld [vmem:[%s2 + $0x10] sm:$0xff]
    %v31 = vld [vmem:[%s2 + $0x18] sm:$0xff]
    %v32 = vld [vmem:[%s3] sm:$0x1]
    %v34 = vlaneseq
    %v35 = vshrl.u32 %v34, 7
    %v36 = vsub.s32 0, %v35
    %v37 = vrot.slane %v32, %v36
    %vm39 = vcmask 261120
    %v41 = vsel %vm39, %v24, 0
    %v44 = vsel %vm39, %v25, 0
    %46 = vmatprep.subr.mxu0 0.0
    %47 = vmatpush1.msra.mxu0 %v28
    %48 = vmatprep.subr.mxu0 0.0
    %49 = vmatpush1.msra.mxu0 %v29
    %50 = vmatprep.subr.mxu0 0.0
    %51 = vmatpush1.msra.mxu0 %v30
    %52 = vmatprep.subr.mxu0 0.0
    %53 = vmatpush1.msra.mxu0 %v31
    %54 = vmatprep.subr.mxu0 0.0
    %55 = vmatpush1.msra.mxu0 0.0
    %56 = vmatprep.subr.mxu0 0.0
    %57 = vmatpush1.msra.mxu0 0.0
    %58 = vmatprep.subr.mxu0 0.0
    %59 = vmatpush1.msra.mxu0 0.0
    %60 = vmatprep.subr.mxu0 0.0
    %61 = vmatpush1.msra.mxu0 0.0
    %62 = vmatprep.subr.mxu0 0.0
    %63 = vmatpush1.msra.mxu0 0.0
    %64 = vmatprep.subr.mxu0 0.0
    %65 = vmatpush1.msra.mxu0 0.0
    %66 = vmatprep.subr.mxu0 0.0
    %67 = vmatpush1.msra.mxu0 0.0
    %68 = vmatprep.subr.mxu0 0.0
    %69 = vmatpush1.msra.mxu0 0.0
    %70 = vmatprep.subr.mxu0 0.0
    %71 = vmatpush1.msra.mxu0 0.0
    %72 = vmatprep.subr.mxu0 0.0
    %73 = vmatpush1.msra.mxu0 0.0
    %74 = vmatprep.subr.mxu0 0.0
    %75 = vmatpush1.msra.mxu0 0.0
    %76 = vmatprep.subr.mxu0 0.0
    %77 = vmatpush1.msra.mxu0 0.0
    %78 = vmatprep.subr.mxu0 0.0
    %79 = vmatpush1.msra.mxu0 0.0
    %80 = vmatprep.subr.mxu0 0.0
    %81 = vmatpush1.msra.mxu0 0.0
    %82 = vmatprep.subr.mxu0 0.0
    %83 = vmatpush1.msra.mxu0 0.0
    %84 = vmatprep.subr.mxu0 0.0
    %85 = vmatpush1.msra.mxu0 0.0
    %86 = vmatprep.subr.mxu0 0.0
    %87 = vmatpush1.msra.mxu0 0.0
    %88 = vmatprep.subr.mxu0 0.0
    %89 = vmatpush1.msra.mxu0 0.0
    %90 = vmatprep.subr.mxu0 0.0
    %91 = vmatpush1.msra.mxu0 0.0
    %92 = vmatprep.subr.mxu0 0.0
    %93 = vmatpush1.msra.mxu0 0.0
    %94 = vmatprep.subr.mxu0 0.0
    %95 = vmatpush1.msra.mxu0 0.0
    %96 = vmatprep.subr.mxu0 0.0
    %97 = vmatpush1.msra.mxu0 0.0
    %98 = vmatprep.subr.mxu0 0.0
    %99 = vmatpush1.msra.mxu0 0.0
    %100 = vmatprep.subr.mxu0 0.0
    %101 = vmatpush1.msra.mxu0 0.0
    %102 = vmatprep.subr.mxu0 0.0
    %103 = vmatpush1.msra.mxu0 0.0
    %104 = vmatprep.subr.mxu0 0.0
    %105 = vmatpush1.msra.mxu0 0.0
    %106 = vmatprep.subr.mxu0 0.0
    %107 = vmatpush1.msra.mxu0 0.0
    %108 = vmatprep.subr.mxu0 0.0
    %109 = vmatpush1.msra.mxu0 0.0
    %110 = vmatprep.mubr.f32.mxu0 0.0
    %111 = vmatmul.mubr.f32.gmra.mrb[0].mxu0 %v41
    %v112 = vpop.f32.mrb[0].mxu0
    %v113 = vadd.f32 %v37, %v112
    %v114 = vpop.f32.mrb[0].mxu0
    %115 = vmatprep.mubr.f32.mxu0 0.0
    %116 = vmatmul.mubr.f32.gmra.mrb[0].mxu0 %v44
    %v117 = vpop.f32.mrb[0].mxu0
    %v118 = vadd.f32 %v37, %v117
    %v119 = vpop.f32.mrb[0].mxu0
    %120 = vdwg.mxu0
    %v121 = vxor.u32 %v113, 2147483648
    %v122 = vxor.u32 %v118, 2147483648
    %v123 = vmul.f32 %v121, 1.442695
    %v124 = vpow.pop %v123
    %v125 = vmul.f32 %v122, 1.442695
    %v126 = vpow.pop %v125
    %v127 = vadd.f32 %v124, 1.0
    %v128 = vadd.f32 %v126, 1.0
    %v129 = vrcp.pop %v127
    %v130 = vmul.f32 1.0, %v129
    %v131 = vrcp.pop %v128
    %v132 = vmul.f32 1.0, %v131
    %134 = vset.pattern.permute.xlu0 0
    %135 = vperm.xlu0 %134, %v26
    %v136 = vpop.permute.xlu0 %135
    %139 = vset.pattern.permute.xlu0 0
    %140 = vperm.xlu0 %139, %v27
    %v141 = vpop.permute.xlu0 %140
    %v143 = vmul.f32 %v136, %v130
    %v144 = vmul.f32 %v141, %v132
    %v145 = vadd.f32 %v143, 1.0
    %v146 = vadd.f32 %v144, 1.0
    %v147 = vmul.f32 %v24, %v145
    %v148 = vmul.f32 %v25, %v146
    %v149 = vld [vmem:[%s4] sm:$0xff]
    %v150 = vld [vmem:[%s4 + $0x8] sm:$0xff]
    %v151 = vld [vmem:[%s4 + $0x10] sm:$0xff]
    %v152 = vld [vmem:[%s4 + $0x18] sm:$0xff]
    %v153 = vld [vmem:[%s5] sm:$0x1]
    %v155 = vlaneseq
    %v156 = vshrl.u32 %v155, 7
    %v157 = vsub.s32 0, %v156
    %v158 = vrot.slane %v153, %v157
    %v161 = vsel %vm39, %v147, 0
    %v164 = vsel %vm39, %v148, 0
    %166 = vmatprep.subr.mxu0 0.0
    %167 = vmatpush1.msra.mxu0 %v149
    %168 = vmatprep.subr.mxu0 0.0
    %169 = vmatpush1.msra.mxu0 %v150
    %170 = vmatprep.subr.mxu0 0.0
    %171 = vmatpush1.msra.mxu0 %v151
    %172 = vmatprep.subr.mxu0 0.0
    %173 = vmatpush1.msra.mxu0 %v152
    %174 = vmatprep.subr.mxu0 0.0
    %175 = vmatpush1.msra.mxu0 0.0
    %176 = vmatprep.subr.mxu0 0.0
    %177 = vmatpush1.msra.mxu0 0.0
    %178 = vmatprep.subr.mxu0 0.0
    %179 = vmatpush1.msra.mxu0 0.0
    %180 = vmatprep.subr.mxu0 0.0
    %181 = vmatpush1.msra.mxu0 0.0
    %182 = vmatprep.subr.mxu0 0.0
    %183 = vmatpush1.msra.mxu0 0.0
    %184 = vmatprep.subr.mxu0 0.0
    %185 = vmatpush1.msra.mxu0 0.0
    %186 = vmatprep.subr.mxu0 0.0
    %187 = vmatpush1.msra.mxu0 0.0
    %188 = vmatprep.subr.mxu0 0.0
    %189 = vmatpush1.msra.mxu0 0.0
    %190 = vmatprep.subr.mxu0 0.0
    %191 = vmatpush1.msra.mxu0 0.0
    %192 = vmatprep.subr.mxu0 0.0
    %193 = vmatpush1.msra.mxu0 0.0
    %194 = vmatprep.subr.mxu0 0.0
    %195 = vmatpush1.msra.mxu0 0.0
    %196 = vmatprep.subr.mxu0 0.0
    %197 = vmatpush1.msra.mxu0 0.0
    %198 = vmatprep.subr.mxu0 0.0
    %199 = vmatpush1.msra.mxu0 0.0
    %200 = vmatprep.subr.mxu0 0.0
    %201 = vmatpush1.msra.mxu0 0.0
    %202 = vmatprep.subr.mxu0 0.0
    %203 = vmatpush1.msra.mxu0 0.0
    %204 = vmatprep.subr.mxu0 0.0
    %205 = vmatpush1.msra.mxu0 0.0
    %206 = vmatprep.subr.mxu0 0.0
    %207 = vmatpush1.msra.mxu0 0.0
    %208 = vmatprep.subr.mxu0 0.0
    %209 = vmatpush1.msra.mxu0 0.0
    %210 = vmatprep.subr.mxu0 0.0
    %211 = vmatpush1.msra.mxu0 0.0
    %212 = vmatprep.subr.mxu0 0.0
    %213 = vmatpush1.msra.mxu0 0.0
    %214 = vmatprep.subr.mxu0 0.0
    %215 = vmatpush1.msra.mxu0 0.0
    %216 = vmatprep.subr.mxu0 0.0
    %217 = vmatpush1.msra.mxu0 0.0
    %218 = vmatprep.subr.mxu0 0.0
    %219 = vmatpush1.msra.mxu0 0.0
    %220 = vmatprep.subr.mxu0 0.0
    %221 = vmatpush1.msra.mxu0 0.0
    %222 = vmatprep.subr.mxu0 0.0
    %223 = vmatpush1.msra.mxu0 0.0
    %224 = vmatprep.subr.mxu0 0.0
    %225 = vmatpush1.msra.mxu0 0.0
    %226 = vmatprep.subr.mxu0 0.0
    %227 = vmatpush1.msra.mxu0 0.0
    %228 = vmatprep.subr.mxu0 0.0
    %229 = vmatpush1.msra.mxu0 0.0
    %230 = vmatprep.mubr.f32.mxu0 0.0
    %231 = vmatmul.mubr.f32.gmra.mrb[0].mxu0 %v161
    %v232 = vpop.f32.mrb[0].mxu0
    %v233 = vadd.f32 %v158, %v232
    %v234 = vpop.f32.mrb[0].mxu0
    %235 = vmatprep.mubr.f32.mxu0 0.0
    %236 = vmatmul.mubr.f32.gmra.mrb[0].mxu0 %v164
    %v237 = vpop.f32.mrb[0].mxu0
    %v238 = vadd.f32 %v158, %v237
    %v239 = vpop.f32.mrb[0].mxu0
    %240 = vdwg.mxu0
    %v241 = vtanh.pop %v233
    %v242 = vtanh.pop %v238
    %243 = vset.pattern.permute.xlu0 1
    %244 = vperm.xlu0 %243, %v26
    %v245 = vpop.permute.xlu0 %244
    %247 = vset.pattern.permute.xlu0 1
    %248 = vperm.xlu0 %247, %v27
    %v249 = vpop.permute.xlu0 %248
    %v251 = vmul.f32 %v245, %v241
    %v252 = vmul.f32 %v249, %v242
    %v253 = vadd.f32 %v147, %v251
    %v254 = vadd.f32 %v148, %v252
    %255 = vst.msk [vmem:[#allocation2] sm:$0xff] %vm39, %v253
    %256 = vst.msk [vmem:[#allocation2 + $0x8] sm:$0xff] %vm39, %v254
    // Predicated region
    $region26: #{neurotransmitter_forward.1} parent=1 // pred_check
      _
    $region27: #{neurotransmitter_forward.1} parent=1 // pred_check_branch
      %258 = sbr.rel (0) target = $region29
    $region28: #{neurotransmitter_forward.1} parent=1 // pred_region
      %s260 = ssub.s32 256, 256
      %261 = vsyncadd [#allocation3], %s260
      %s262 = sshll.u32 [#allocation2], 4
      %s263 = int_to_ptr.vmem [resolvable:$true] %s262
      %268 = dma.vmem_to_hbm [thread:$0]  %s263, 256, %s6, [#allocation3], 128, 128, 8
    $region29: #{neurotransmitter_forward.1} parent=1 // pred_fallthru
      _
    // Predicated region
    $region30: #{neurotransmitter_forward.1} parent=1 // pred_check
      _
    $region31: #{neurotransmitter_forward.1} parent=1 // pred_check_branch
      %270 = sbr.rel (0) target = $region33
    $region32: #{neurotransmitter_forward.1} parent=1 // pred_region
      %271 = dma.done [#allocation3], 256
    $region33: #{neurotransmitter_forward.1} parent=1 // pred_fallthru
      _
    %272 = vsyncpa [#allocation3], 1

</llo_original>
